<compile_context>
chip_gen: v7x
topology: tpu7x:2x2x1
jax: 0.10.0
libtpu: 0.0.40
codegen_flags: <defaults>
</compile_context>

<pallas_src>
import functools
import math

import jax
import jax.numpy as jnp
from jax import lax
from jax.experimental import pallas as pl
from jax.experimental.pallas import tpu as pltpu


def _round_up(v, m):
    return ((v + m - 1) // m) * m


# ------------------------------ fused GAT + temporal kernel ------------------------------
def _d3_fused_kernel(x_ref, maskb_ref, waug_ref, aux_ref, t1_ref, t2_ref, o_ref,
                     *, n_nodes, n_steps, c_out):
    N = n_nodes
    TN = n_steps * n_nodes
    C = c_out

    # ---- GAT linear: one (T*N, F_in) @ (F_in, C_pad) f32 matmul.  Column C of W_aug holds
    #      W @ a_dst^T, so alpha_dst for every node rides the same MXU push for free. ----
    h_aug = jnp.dot(x_ref[...], waug_ref[...],
                    preferred_element_type=jnp.float32)                       # (TN, C_pad)

    a_src_row = aux_ref[0:1, :]          # (1, C_pad) a_src, zero in padded cols (incl. col C)
    bias_row = aux_ref[1:2, :]           # (1, C_pad) GAT bias, zero-padded
    col_mask = aux_ref[2:3, :]           # (1, C_pad) 1.0 for cols < C else 0.0

    alpha_dst = h_aug[:, C:C + 1]                                             # (TN, 1)
    alpha_src = lax.dot_general(a_src_row, h_aug, (((1,), (1,)), ((), ())),
                                preferred_element_type=jnp.float32)           # (1, TN) lane-dense

    # attention logits e[dst, src]; block-diagonal -1e30 mask keeps time steps independent
    e = alpha_dst + alpha_src                                                 # (TN, TN)
    e = jnp.maximum(e, 0.2 * e)                                               # LeakyReLU(0.2)
    e = e + maskb_ref[...].astype(jnp.float32)

    # softmax over sources (lane axis); masked entries underflow exp() to exactly 0
    e_max = jnp.max(e, axis=-1, keepdims=True)
    p = jnp.exp(e - e_max)
    denom = jnp.sum(p, axis=-1, keepdims=True)                                # (TN, 1)

    # aggregate: zero the alpha_dst column before the matmul so padded cols stay exactly zero
    h_feat = h_aug * col_mask                                                 # (TN, C_pad)
    agg = jnp.dot(p, h_feat, preferred_element_type=jnp.float32)              # (TN, C_pad)
    gat_out = agg / denom + bias_row                                          # (TN, C_pad)

    # ---- temporal attention: per-node cosine similarity between consecutive steps ----
    eps = jnp.float32(1e-8)
    prev = gat_out[:TN - N, :]           # out[:-1] flattened, sublane slice
    nxt = gat_out[N:, :]                 # out[1:]  flattened, sublane slice
    dot = jnp.sum(prev * nxt, axis=-1, keepdims=True)
    na = jnp.maximum(jnp.sqrt(jnp.sum(prev * prev, axis=-1, keepdims=True)), eps)
    nb = jnp.maximum(jnp.sqrt(jnp.sum(nxt * nxt, axis=-1, keepdims=True)), eps)
    cos = dot / (na * nb)                                                     # ((T-1)*N, 1)

    # batched temporal matmuls (padded cols of t1/t2 are zero, so padding stays zero)
    y2 = jnp.dot(cos * prev, t2_ref[...],
                 preferred_element_type=jnp.float32)   # contributes to rows N .. TN-1
    y1 = jnp.dot(cos * nxt, t1_ref[...],
                 preferred_element_type=jnp.float32)   # contributes to rows 0 .. TN-N-1

    zpad = jnp.zeros((N, gat_out.shape[1]), jnp.float32)
    result = (gat_out
              + jnp.concatenate([zpad, y2], axis=0)
              + jnp.concatenate([y1, zpad], axis=0))
    o_ref[...] = result                  # single lane-dense (TN, C_pad) store


# ----------------------------------------- wrapper ---------------------------------------
def d3_graph_conv_at(x, adj, params):
    """x: (T, N, F_in) float32, adj: (T, N, N) float32 (dense edge_index)."""
    T, N, F_in = x.shape
    C = params["w"].shape[1]
    TN = T * N
    C_pad = _round_up(C + 1, 128)        # lane-dense width; col C reserved for alpha_dst

    x2d = x.reshape(TN, F_in).astype(jnp.float32)

    # W_aug: cols [0:C] = W, col C = W @ a_dst^T (alpha_dst rides the main matmul), rest 0.
    w = params["w"].astype(jnp.float32)
    wa_dst = w @ params["a_dst"].reshape(C, 1)                                # (F_in, 1)
    w_aug = jnp.zeros((F_in, C_pad), jnp.float32)
    w_aug = w_aug.at[:, :C].set(w).at[:, C:C + 1].set(wa_dst)

    # aux rows: 0 = a_src (padded), 1 = GAT bias (padded), 2 = column mask for cols < C.
    aux = jnp.zeros((8, C_pad), jnp.float32)
    aux = aux.at[0, :C].set(params["a_src"].reshape(C))
    aux = aux.at[1, :C].set(params["bias"].reshape(C))
    aux = aux.at[2, :C].set(1.0)

    t1_pad = jnp.zeros((C_pad, C_pad), jnp.float32).at[:C, :C].set(params["t1"])
    t2_pad = jnp.zeros((C_pad, C_pad), jnp.float32).at[:C, :C].set(params["t2"])

    # Block-diagonal additive attention mask (bf16):
    #   mask[t*N+i, t'*N+j] = 0 if (t == t') and (edge j->i at t, or i == j), else -1e30.
    adj_t = jnp.swapaxes(adj, 1, 2)                                           # [t, dst, src]
    valid = (adj_t != 0) | jnp.eye(N, dtype=bool)[None, :, :]
    eye_t = jnp.eye(T, dtype=bool)
    valid_big = (eye_t[:, None, :, None] & valid[:, :, None, :]).reshape(TN, TN)
    mask_bias = jnp.where(valid_big, 0.0, -1e30).astype(jnp.bfloat16)

    kernel = functools.partial(_d3_fused_kernel, n_nodes=N, n_steps=T, c_out=C)

    out_pad = pl.pallas_call(
        kernel,
        out_shape=jax.ShapeDtypeStruct((TN, C_pad), jnp.float32),
        in_specs=[
            pl.BlockSpec((TN, F_in), lambda: (0, 0)),
            pl.BlockSpec((TN, TN), lambda: (0, 0)),
            pl.BlockSpec((F_in, C_pad), lambda: (0, 0)),
            pl.BlockSpec((8, C_pad), lambda: (0, 0)),
            pl.BlockSpec((C_pad, C_pad), lambda: (0, 0)),
            pl.BlockSpec((C_pad, C_pad), lambda: (0, 0)),
        ],
        out_specs=pl.BlockSpec((TN, C_pad), lambda: (0, 0)),
        # Problem is < 1 MiB of VMEM; 32 MiB scoped limit is safe on v5e/v6e/v7x.
        compiler_params=pltpu.CompilerParams(vmem_limit_bytes=32 * 1024 * 1024),
    )(x2d, mask_bias, w_aug, aux, t1_pad, t2_pad)

    return out_pad[:, :C].reshape(T, N, C)


def init_params(key, in_channels, out_channels):
    """Deterministic synthetic init mirroring the module's parameter shapes."""
    k_w, k_as, k_ad, k_t1, k_t2 = jax.random.split(key, 5)
    glorot = math.sqrt(6.0 / (in_channels + out_channels))
    stdv = 1.0 / math.sqrt(in_channels)
    return {
        # GATConv(in_channels, out_channels, heads=1)
        "w": jax.random.uniform(k_w, (in_channels, out_channels), jnp.float32,
                                -glorot, glorot),
        "a_src": jax.random.uniform(k_as, (1, out_channels), jnp.float32,
                                    -glorot, glorot),
        "a_dst": jax.random.uniform(k_ad, (1, out_channels), jnp.float32,
                                    -glorot, glorot),
        "bias": jnp.zeros((1, out_channels), jnp.float32),
        # t1_weight, t2_weight: (out_channels, out_channels), uniform(-stdv, stdv)
        "t1": jax.random.uniform(k_t1, (out_channels, out_channels), jnp.float32,
                                 -stdv, stdv),
        "t2": jax.random.uniform(k_t2, (out_channels, out_channels), jnp.float32,
                                 -stdv, stdv),
    }


if __name__ == "__main__":
    T, N, F_in, C_out = 4, 16, 8, 32

    key = jax.random.PRNGKey(0)
    k_x, k_adj, k_params = jax.random.split(key, 3)

    x = jax.random.normal(k_x, (T, N, F_in), jnp.float32)
    # random directed adjacency (dense form of edge_index)
    adj = (jax.random.uniform(k_adj, (T, N, N)) < 0.3).astype(jnp.float32)

    params = init_params(k_params, F_in, C_out)

    fwd = jax.jit(d3_graph_conv_at)
    out = fwd(x, adj, params)
    out = jax.block_until_ready(out)

    assert out.shape == (T, N, C_out)
    assert bool(jnp.all(jnp.isfinite(out)))
    print("KERNEL_OK")
</pallas_src>

<mosaic_0001>
module attributes {stable_mosaic.version = 11 : i64} {
  func.func @_d3_fused_kernel(%arg0: memref<64x8xf32, #tpu.memory_space<vmem>>, %arg1: memref<64x64xbf16, #tpu.memory_space<vmem>>, %arg2: memref<8x128xf32, #tpu.memory_space<vmem>>, %arg3: memref<8x128xf32, #tpu.memory_space<vmem>>, %arg4: memref<128x128xf32, #tpu.memory_space<vmem>>, %arg5: memref<128x128xf32, #tpu.memory_space<vmem>>, %arg6: memref<64x128xf32, #tpu.memory_space<vmem>>) attributes {dimension_semantics = [], scalar_prefetch = 0 : i64, scratch_operands = 0 : i64, tpu.core_type = #tpu.core_type<tc>} {
    %c0 = arith.constant 0 : index
    %c0_0 = arith.constant 0 : index
    %0 = vector.load %arg0[%c0, %c0_0] : memref<64x8xf32, #tpu.memory_space<vmem>>, vector<64x8xf32>
    %c0_1 = arith.constant 0 : index
    %c0_2 = arith.constant 0 : index
    %1 = vector.load %arg2[%c0_1, %c0_2] : memref<8x128xf32, #tpu.memory_space<vmem>>, vector<8x128xf32>
    %cst = arith.constant dense<0.000000e+00> : vector<64x128xf32>
    %2 = tpu.matmul %0, %1, %cst {dimension_numbers = #tpu.dot_dimension_numbers<[1], [0], [0], [1], [0, 0, 1, 1], [], []>} : vector<64x8xf32>, vector<8x128xf32>, vector<64x128xf32> -> vector<64x128xf32>
    %c0_3 = arith.constant 0 : index
    %c0_4 = arith.constant 0 : index
    %3 = vector.load %arg3[%c0_3, %c0_4] : memref<8x128xf32, #tpu.memory_space<vmem>>, vector<1x128xf32>
    %c1 = arith.constant 1 : index
    %c0_5 = arith.constant 0 : index
    %4 = vector.load %arg3[%c1, %c0_5] : memref<8x128xf32, #tpu.memory_space<vmem>>, vector<1x128xf32>
    %c2 = arith.constant 2 : index
    %c0_6 = arith.constant 0 : index
    %5 = vector.load %arg3[%c2, %c0_6] : memref<8x128xf32, #tpu.memory_space<vmem>>, vector<1x128xf32>
    %6 = vector.extract_strided_slice %2 {offsets = [0, 32], sizes = [64, 1], strides = [1, 1]} : vector<64x128xf32> to vector<64x1xf32>
    %cst_7 = arith.constant dense<0.000000e+00> : vector<1x64xf32>
    %7 = tpu.matmul %3, %2, %cst_7 {dimension_numbers = #tpu.dot_dimension_numbers<[1], [1], [0], [0], [0, 0, 1, 0], [], []>} : vector<1x128xf32>, vector<64x128xf32>, vector<1x64xf32> -> vector<1x64xf32>
    %8 = vector.broadcast %6 : vector<64x1xf32> to vector<64x64xf32>
    %9 = vector.broadcast %7 : vector<1x64xf32> to vector<64x64xf32>
    %10 = arith.addf %8, %9 : vector<64x64xf32>
    %cst_8 = arith.constant 2.000000e-01 : f32
    %11 = vector.broadcast %cst_8 : f32 to vector<64x64xf32>
    %12 = arith.mulf %11, %10 : vector<64x64xf32>
    %13 = arith.maximumf %10, %12 : vector<64x64xf32>
    %c0_9 = arith.constant 0 : index
    %c0_10 = arith.constant 0 : index
    %14 = vector.load %arg1[%c0_9, %c0_10] : memref<64x64xbf16, #tpu.memory_space<vmem>>, vector<64x64xbf16>
    %15 = arith.extf %14 : vector<64x64xbf16> to vector<64x64xf32>
    %16 = arith.addf %13, %15 : vector<64x64xf32>
    %cst_11 = arith.constant dense<0xFF800000> : vector<64xf32>
    %17 = vector.multi_reduction <maximumf>, %16, %cst_11 [1] : vector<64x64xf32> to vector<64xf32>
    %18 = vector.shape_cast %17 : vector<64xf32> to vector<64x1xf32>
    %19 = vector.broadcast %18 : vector<64x1xf32> to vector<64x64xf32>
    %20 = arith.subf %16, %19 : vector<64x64xf32>
    %21 = math.exp %20 : vector<64x64xf32>
    %cst_12 = arith.constant dense<0.000000e+00> : vector<64xf32>
    %22 = vector.multi_reduction <add>, %21, %cst_12 [1] : vector<64x64xf32> to vector<64xf32>
    %23 = vector.shape_cast %22 : vector<64xf32> to vector<64x1xf32>
    %24 = vector.broadcast %5 : vector<1x128xf32> to vector<64x128xf32>
    %25 = arith.mulf %2, %24 : vector<64x128xf32>
    %cst_13 = arith.constant dense<0.000000e+00> : vector<64x128xf32>
    %26 = tpu.matmul %21, %25, %cst_13 {dimension_numbers = #tpu.dot_dimension_numbers<[1], [0], [0], [1], [0, 0, 1, 1], [], []>} : vector<64x64xf32>, vector<64x128xf32>, vector<64x128xf32> -> vector<64x128xf32>
    %27 = vector.broadcast %23 : vector<64x1xf32> to vector<64x128xf32>
    %28 = arith.divf %26, %27 : vector<64x128xf32>
    %29 = vector.broadcast %4 : vector<1x128xf32> to vector<64x128xf32>
    %30 = arith.addf %28, %29 : vector<64x128xf32>
    %31 = vector.extract_strided_slice %30 {offsets = [0, 0], sizes = [48, 128], strides = [1, 1]} : vector<64x128xf32> to vector<48x128xf32>
    %32 = vector.extract_strided_slice %30 {offsets = [16, 0], sizes = [48, 128], strides = [1, 1]} : vector<64x128xf32> to vector<48x128xf32>
    %33 = arith.mulf %31, %32 : vector<48x128xf32>
    %cst_14 = arith.constant dense<0.000000e+00> : vector<48xf32>
    %34 = vector.multi_reduction <add>, %33, %cst_14 [1] : vector<48x128xf32> to vector<48xf32>
    %35 = vector.shape_cast %34 : vector<48xf32> to vector<48x1xf32>
    %36 = arith.mulf %31, %31 : vector<48x128xf32>
    %cst_15 = arith.constant dense<0.000000e+00> : vector<48xf32>
    %37 = vector.multi_reduction <add>, %36, %cst_15 [1] : vector<48x128xf32> to vector<48xf32>
    %38 = vector.shape_cast %37 : vector<48xf32> to vector<48x1xf32>
    %39 = math.sqrt %38 : vector<48x1xf32>
    %cst_16 = arith.constant 9.99999993E-9 : f32
    %40 = vector.broadcast %cst_16 : f32 to vector<48x1xf32>
    %41 = arith.maximumf %39, %40 : vector<48x1xf32>
    %42 = arith.mulf %32, %32 : vector<48x128xf32>
    %cst_17 = arith.constant dense<0.000000e+00> : vector<48xf32>
    %43 = vector.multi_reduction <add>, %42, %cst_17 [1] : vector<48x128xf32> to vector<48xf32>
    %44 = vector.shape_cast %43 : vector<48xf32> to vector<48x1xf32>
    %45 = math.sqrt %44 : vector<48x1xf32>
    %cst_18 = arith.constant 9.99999993E-9 : f32
    %46 = vector.broadcast %cst_18 : f32 to vector<48x1xf32>
    %47 = arith.maximumf %45, %46 : vector<48x1xf32>
    %48 = arith.mulf %41, %47 : vector<48x1xf32>
    %49 = arith.divf %35, %48 : vector<48x1xf32>
    %50 = vector.broadcast %49 : vector<48x1xf32> to vector<48x128xf32>
    %51 = arith.mulf %50, %31 : vector<48x128xf32>
    %c0_19 = arith.constant 0 : index
    %c0_20 = arith.constant 0 : index
    %52 = vector.load %arg5[%c0_19, %c0_20] : memref<128x128xf32, #tpu.memory_space<vmem>>, vector<128x128xf32>
    %cst_21 = arith.constant dense<0.000000e+00> : vector<48x128xf32>
    %53 = tpu.matmul %51, %52, %cst_21 {dimension_numbers = #tpu.dot_dimension_numbers<[1], [0], [0], [1], [0, 0, 1, 1], [], []>} : vector<48x128xf32>, vector<128x128xf32>, vector<48x128xf32> -> vector<48x128xf32>
    %54 = vector.broadcast %49 : vector<48x1xf32> to vector<48x128xf32>
    %55 = arith.mulf %54, %32 : vector<48x128xf32>
    %c0_22 = arith.constant 0 : index
    %c0_23 = arith.constant 0 : index
    %56 = vector.load %arg4[%c0_22, %c0_23] : memref<128x128xf32, #tpu.memory_space<vmem>>, vector<128x128xf32>
    %cst_24 = arith.constant dense<0.000000e+00> : vector<48x128xf32>
    %57 = tpu.matmul %55, %56, %cst_24 {dimension_numbers = #tpu.dot_dimension_numbers<[1], [0], [0], [1], [0, 0, 1, 1], [], []>} : vector<48x128xf32>, vector<128x128xf32>, vector<48x128xf32> -> vector<48x128xf32>
    %cst_25 = arith.constant 0.000000e+00 : f32
    %58 = vector.broadcast %cst_25 : f32 to vector<16x128xf32>
    %59 = tpu.concatenate %58, %53 in 0 : vector<16x128xf32>, vector<48x128xf32> -> vector<64x128xf32>
    %60 = arith.addf %30, %59 : vector<64x128xf32>
    %61 = tpu.concatenate %57, %58 in 0 : vector<48x128xf32>, vector<16x128xf32> -> vector<64x128xf32>
    %62 = arith.addf %60, %61 : vector<64x128xf32>
    %c0_26 = arith.constant 0 : index
    %c0_27 = arith.constant 0 : index
    %63 = vector.load %arg6[%c0_26, %c0_27] : memref<64x128xf32, #tpu.memory_space<vmem>>, vector<64x128xf32>
    tpu.vector_store %arg6[%c0_26, %c0_27], %62 {strides = array<i32>} : memref<64x128xf32, #tpu.memory_space<vmem>>, vector<64x128xf32>,
    return
  }
}

</mosaic_0001>

<llo_original>
// kernel: d3_graph_conv_at.1
$region0: #{d3_graph_conv_at.1}
  #allocation0 [shape = 'u32[]', space=smem, size = 0x4, offset = 0x4, fixed_abs, tag = 'smem constant byte address 0x4 - core index']
  #allocation1 [shape = 'u32[144,128]{1,0:T(1,128)}', space=vmem, size = 0x12000, scoped, tag = 'internal scratch']
  %s0 = inlined_call_operand.vmem [shape: f32[64,8], index: 0, kind: input, shape index: {}]
  %s1 = inlined_call_operand.vmem [shape: bf16[64,64], index: 1, kind: input, shape index: {}]
  %s2 = inlined_call_operand.vmem [shape: f32[8,128], index: 2, kind: input, shape index: {}]
  %s3 = inlined_call_operand.vmem [shape: f32[8,128], index: 3, kind: input, shape index: {}]
  %s4 = inlined_call_operand.vmem [shape: f32[128,128], index: 4, kind: input, shape index: {}]
  %s5 = inlined_call_operand.vmem [shape: f32[128,128], index: 5, kind: input, shape index: {}]
  %s6 = inlined_call_operand.hbm [shape: f32[64,128], index: 6, kind: output, shape index: {}]
  %s7 = sld [smem:[#allocation0]]
  $region34: #{d3_graph_conv_at.1} parent=0
    _
  %s9 = ssub.s32 1, %s7
  %s10 = scalar_select 0, %s9, %s7
  $region1: #{d3_graph_conv_at.1} parent=0
    #allocation2 [shape = 'u8[32768]{0}', space=vmem, size = 0x8000, scoped, tag = 'output window, operand 0, single buffered']
    #allocation3 [shape = 's32[1]{0}', space=sflag, size = 0x4, scoped, tag = 'scoped memory for d3_graph_conv_at.1']
    %11 = vsyncpa [#allocation3], 0
    // Predicated region
    $region2: #{d3_graph_conv_at.1} parent=1 // pred_check
      _
    $region3: #{d3_graph_conv_at.1} parent=1 // pred_check_branch
      %13 = sbr.rel (0) target = $region5
    $region4: #{d3_graph_conv_at.1} parent=1 // pred_region
      _
    $region5: #{d3_graph_conv_at.1} parent=1 // pred_fallthru
      _
    // Predicated region
    $region6: #{d3_graph_conv_at.1} parent=1 // pred_check
      _
    $region7: #{d3_graph_conv_at.1} parent=1 // pred_check_branch
      %15 = sbr.rel (0) target = $region9
    $region8: #{d3_graph_conv_at.1} parent=1 // pred_region
      _
    $region9: #{d3_graph_conv_at.1} parent=1 // pred_fallthru
      _
    // Predicated region
    $region10: #{d3_graph_conv_at.1} parent=1 // pred_check
      _
    $region11: #{d3_graph_conv_at.1} parent=1 // pred_check_branch
      %17 = sbr.rel (0) target = $region13
    $region12: #{d3_graph_conv_at.1} parent=1 // pred_region
      _
    $region13: #{d3_graph_conv_at.1} parent=1 // pred_fallthru
      _
    // Predicated region
    $region14: #{d3_graph_conv_at.1} parent=1 // pred_check
      _
    $region15: #{d3_graph_conv_at.1} parent=1 // pred_check_branch
      %19 = sbr.rel (0) target = $region17
    $region16: #{d3_graph_conv_at.1} parent=1 // pred_region
      _
    $region17: #{d3_graph_conv_at.1} parent=1 // pred_fallthru
      _
    // Predicated region
    $region18: #{d3_graph_conv_at.1} parent=1 // pred_check
      _
    $region19: #{d3_graph_conv_at.1} parent=1 // pred_check_branch
      %21 = sbr.rel (0) target = $region21
    $region20: #{d3_graph_conv_at.1} parent=1 // pred_region
      _
    $region21: #{d3_graph_conv_at.1} parent=1 // pred_fallthru
      _
    // Predicated region
    $region22: #{d3_graph_conv_at.1} parent=1 // pred_check
      _
    $region23: #{d3_graph_conv_at.1} parent=1 // pred_check_branch
      %23 = sbr.rel (0) target = $region25
    $region24: #{d3_graph_conv_at.1} parent=1 // pred_region
      _
    $region25: #{d3_graph_conv_at.1} parent=1 // pred_fallthru
      _
    %v24 = vld [vmem:[%s0] sm:$0xff]
    %v25 = vld [vmem:[%s0 + $0x8] sm:$0xff]
    %v26 = vld [vmem:[%s0 + $0x10] sm:$0xff]
    %v27 = vld [vmem:[%s0 + $0x18] sm:$0xff]
    %v28 = vld [vmem:[%s0 + $0x20] sm:$0xff]
    %v29 = vld [vmem:[%s0 + $0x28] sm:$0xff]
    %v30 = vld [vmem:[%s0 + $0x30] sm:$0xff]
    %v31 = vld [vmem:[%s0 + $0x38] sm:$0xff]
    %v32 = vld [vmem:[%s2] sm:$0xff]
    %vm33 = vcmask 64512
    %v35 = vsel %vm33, %v24, 0
    %v38 = vsel %vm33, %v25, 0
    %v41 = vsel %vm33, %v26, 0
    %v44 = vsel %vm33, %v27, 0
    %v47 = vsel %vm33, %v28, 0
    %v50 = vsel %vm33, %v29, 0
    %v53 = vsel %vm33, %v30, 0
    %v56 = vsel %vm33, %v31, 0
    %58 = vmatprep.subr.mxu0 0.0
    %59 = vmatpush1.msra.mxu0 %v32
    %60 = vmatprep.subr.mxu0 0.0
    %61 = vmatpush1.msra.mxu0 0.0
    %62 = vmatprep.subr.mxu0 0.0
    %63 = vmatpush1.msra.mxu0 0.0
    %64 = vmatprep.subr.mxu0 0.0
    %65 = vmatpush1.msra.mxu0 0.0
    %66 = vmatprep.subr.mxu0 0.0
    %67 = vmatpush1.msra.mxu0 0.0
    %68 = vmatprep.subr.mxu0 0.0
    %69 = vmatpush1.msra.mxu0 0.0
    %70 = vmatprep.subr.mxu0 0.0
    %71 = vmatpush1.msra.mxu0 0.0
    %72 = vmatprep.subr.mxu0 0.0
    %73 = vmatpush1.msra.mxu0 0.0
    %74 = vmatprep.subr.mxu0 0.0
    %75 = vmatpush1.msra.mxu0 0.0
    %76 = vmatprep.subr.mxu0 0.0
    %77 = vmatpush1.msra.mxu0 0.0
    %78 = vmatprep.subr.mxu0 0.0
    %79 = vmatpush1.msra.mxu0 0.0
    %80 = vmatprep.subr.mxu0 0.0
    %81 = vmatpush1.msra.mxu0 0.0
    %82 = vmatprep.subr.mxu0 0.0
    %83 = vmatpush1.msra.mxu0 0.0
    %84 = vmatprep.subr.mxu0 0.0
    %85 = vmatpush1.msra.mxu0 0.0
    %86 = vmatprep.subr.mxu0 0.0
    %87 = vmatpush1.msra.mxu0 0.0
    %88 = vmatprep.subr.mxu0 0.0
    %89 = vmatpush1.msra.mxu0 0.0
    %90 = vmatprep.subr.mxu0 0.0
    %91 = vmatpush1.msra.mxu0 0.0
    %92 = vmatprep.subr.mxu0 0.0
    %93 = vmatpush1.msra.mxu0 0.0
    %94 = vmatprep.subr.mxu0 0.0
    %95 = vmatpush1.msra.mxu0 0.0
    %96 = vmatprep.subr.mxu0 0.0
    %97 = vmatpush1.msra.mxu0 0.0
    %98 = vmatprep.subr.mxu0 0.0
    %99 = vmatpush1.msra.mxu0 0.0
    %100 = vmatprep.subr.mxu0 0.0
    %101 = vmatpush1.msra.mxu0 0.0
    %102 = vmatprep.subr.mxu0 0.0
    %103 = vmatpush1.msra.mxu0 0.0
    %104 = vmatprep.subr.mxu0 0.0
    %105 = vmatpush1.msra.mxu0 0.0
    %106 = vmatprep.subr.mxu0 0.0
    %107 = vmatpush1.msra.mxu0 0.0
    %108 = vmatprep.subr.mxu0 0.0
    %109 = vmatpush1.msra.mxu0 0.0
    %110 = vmatprep.subr.mxu0 0.0
    %111 = vmatpush1.msra.mxu0 0.0
    %112 = vmatprep.subr.mxu0 0.0
    %113 = vmatpush1.msra.mxu0 0.0
    %114 = vmatprep.subr.mxu0 0.0
    %115 = vmatpush1.msra.mxu0 0.0
    %116 = vmatprep.subr.mxu0 0.0
    %117 = vmatpush1.msra.mxu0 0.0
    %118 = vmatprep.subr.mxu0 0.0
    %119 = vmatpush1.msra.mxu0 0.0
    %120 = vmatprep.subr.mxu0 0.0
    %121 = vmatpush1.msra.mxu0 0.0
    %122 = vmatprep.mubr.f32.mxu0 0.0
    %123 = vmatmul.mubr.f32.gmra.mrb[0].mxu0 %v35
    %v124 = vpop.f32.mrb[0].mxu0
    %v125 = vadd.f32 0.0, %v124
    %v126 = vpop.f32.mrb[0].mxu0
    %127 = vmatprep.mubr.f32.mxu0 0.0
    %128 = vmatmul.mubr.f32.gmra.mrb[0].mxu0 %v38
    %v129 = vpop.f32.mrb[0].mxu0
    %v130 = vadd.f32 0.0, %v129
    %v131 = vpop.f32.mrb[0].mxu0
    %132 = vmatprep.mubr.f32.mxu0 0.0
    %133 = vmatmul.mubr.f32.gmra.mrb[0].mxu0 %v41
    %v134 = vpop.f32.mrb[0].mxu0
    %v135 = vadd.f32 0.0, %v134
    %v136 = vpop.f32.mrb[0].mxu0
    %137 = vmatprep.mubr.f32.mxu0 0.0
    %138 = vmatmul.mubr.f32.gmra.mrb[0].mxu0 %v44
    %v139 = vpop.f32.mrb[0].mxu0
    %v140 = vadd.f32 0.0, %v139
    %v141 = vpop.f32.mrb[0].mxu0
    %142 = vmatprep.mubr.f32.mxu0 0.0
    %143 = vmatmul.mubr.f32.gmra.mrb[0].mxu0 %v47
    %v144 = vpop.f32.mrb[0].mxu0
    %v145 = vadd.f32 0.0, %v144
    %v146 = vpop.f32.mrb[0].mxu0
    %147 = vmatprep.mubr.f32.mxu0 0.0
    %148 = vmatmul.mubr.f32.gmra.mrb[0].mxu0 %v50
    %v149 = vpop.f32.mrb[0].mxu0
    %v150 = vadd.f32 0.0, %v149
    %v151 = vpop.f32.mrb[0].mxu0
    %152 = vmatprep.mubr.f32.mxu0 0.0
    %153 = vmatmul.mubr.f32.gmra.mrb[0].mxu0 %v53
    %v154 = vpop.f32.mrb[0].mxu0
    %v155 = vadd.f32 0.0, %v154
    %v156 = vpop.f32.mrb[0].mxu0
    %157 = vmatprep.mubr.f32.mxu0 0.0
    %158 = vmatmul.mubr.f32.gmra.mrb[0].mxu0 %v56
    %v159 = vpop.f32.mrb[0].mxu0
    %v160 = vadd.f32 0.0, %v159
    %v161 = vpop.f32.mrb[0].mxu0
    %162 = vdwg.mxu0
    %v163 = vld [vmem:[%s3] sm:$0x1]
    %v164 = vld [vmem:[%s3 + $0x1] sm:$0x1]
    %v165 = vld [vmem:[%s3 + $0x2] sm:$0x1]
    %166 = vmatprep.subr.mxu0 0.0
    %167 = vmatpush1.xpose.msra.mxu0 %v125
    %168 = vmatprep.subr.mxu0 0.0
    %169 = vmatpush1.xpose.msra.mxu0 %v130
    %170 = vmatprep.subr.mxu0 0.0
    %171 = vmatpush1.xpose.msra.mxu0 %v135
    %172 = vmatprep.subr.mxu0 0.0
    %173 = vmatpush1.xpose.msra.mxu0 %v140
    %174 = vmatprep.subr.mxu0 0.0
    %175 = vmatpush1.xpose.msra.mxu0 %v145
    %176 = vmatprep.subr.mxu0 0.0
    %177 = vmatpush1.xpose.msra.mxu0 %v150
    %178 = vmatprep.subr.mxu0 0.0
    %179 = vmatpush1.xpose.msra.mxu0 %v155
    %180 = vmatprep.subr.mxu0 0.0
    %181 = vmatpush1.xpose.msra.mxu0 %v160
    %182 = vmatprep.subr.mxu0 0.0
    %183 = vmatpush1.xpose.msra.mxu0 0.0
    %184 = vmatprep.subr.mxu0 0.0
    %185 = vmatpush1.xpose.msra.mxu0 0.0
    %186 = vmatprep.subr.mxu0 0.0
    %187 = vmatpush1.xpose.msra.mxu0 0.0
    %188 = vmatprep.subr.mxu0 0.0
    %189 = vmatpush1.xpose.msra.mxu0 0.0
    %190 = vmatprep.subr.mxu0 0.0
    %191 = vmatpush1.xpose.msra.mxu0 0.0
    %192 = vmatprep.subr.mxu0 0.0
    %193 = vmatpush1.xpose.msra.mxu0 0.0
    %194 = vmatprep.subr.mxu0 0.0
    %195 = vmatpush1.xpose.msra.mxu0 0.0
    %196 = vmatprep.subr.mxu0 0.0
    %197 = vmatpush1.xpose.msra.mxu0 0.0
    %198 = vmatprep.subr.mxu0 0.0
    %199 = vmatpush1.xpose.msra.mxu0 0.0
    %200 = vmatprep.subr.mxu0 0.0
    %201 = vmatpush1.xpose.msra.mxu0 0.0
    %202 = vmatprep.subr.mxu0 0.0
    %203 = vmatpush1.xpose.msra.mxu0 0.0
    %204 = vmatprep.subr.mxu0 0.0
    %205 = vmatpush1.xpose.msra.mxu0 0.0
    %206 = vmatprep.subr.mxu0 0.0
    %207 = vmatpush1.xpose.msra.mxu0 0.0
    %208 = vmatprep.subr.mxu0 0.0
    %209 = vmatpush1.xpose.msra.mxu0 0.0
    %210 = vmatprep.subr.mxu0 0.0
    %211 = vmatpush1.xpose.msra.mxu0 0.0
    %212 = vmatprep.subr.mxu0 0.0
    %213 = vmatpush1.xpose.msra.mxu0 0.0
    %214 = vmatprep.subr.mxu0 0.0
    %215 = vmatpush1.xpose.msra.mxu0 0.0
    %216 = vmatprep.subr.mxu0 0.0
    %217 = vmatpush1.xpose.msra.mxu0 0.0
    %218 = vmatprep.subr.mxu0 0.0
    %219 = vmatpush1.xpose.msra.mxu0 0.0
    %220 = vmatprep.subr.mxu0 0.0
    %221 = vmatpush1.xpose.msra.mxu0 0.0
    %222 = vmatprep.subr.mxu0 0.0
    %223 = vmatpush1.xpose.msra.mxu0 0.0
    %224 = vmatprep.subr.mxu0 0.0
    %225 = vmatpush1.xpose.msra.mxu0 0.0
    %226 = vmatprep.subr.mxu0 0.0
    %227 = vmatpush1.xpose.msra.mxu0 0.0
    %228 = vmatprep.subr.mxu0 0.0
    %229 = vmatpush1.xpose.msra.mxu0 0.0
    %230 = vmatprep.mubr.f32.mxu0 0.0
    %231 = vmatmul.mubr.f32.gmra.mrb[0].mxu0 %v163
    %v232 = vpop.f32.mrb[0].mxu0
    %v233 = vadd.f32 0.0, %v232
    %v234 = vpop.f32.mrb[0].mxu0
    %235 = vdwg.mxu0
    %237 = vset.pattern.permute.xlu0 32
    %238 = vperm.xlu0 %237, %v125
    %v239 = vpop.permute.xlu0 %238
    %242 = vset.pattern.permute.xlu0 32
    %243 = vperm.xlu0 %242, %v130
    %v244 = vpop.permute.xlu0 %243
    %247 = vset.pattern.permute.xlu0 32
    %248 = vperm.xlu0 %247, %v135
    %v249 = vpop.permute.xlu0 %248
    %252 = vset.pattern.permute.xlu0 32
    %253 = vperm.xlu0 %252, %v140
    %v254 = vpop.permute.xlu0 %253
    %257 = vset.pattern.permute.xlu0 32
    %258 = vperm.xlu0 %257, %v145
    %v259 = vpop.permute.xlu0 %258
    %262 = vset.pattern.permute.xlu0 32
    %263 = vperm.xlu0 %262, %v150
    %v264 = vpop.permute.xlu0 %263
    %267 = vset.pattern.permute.xlu0 32
    %268 = vperm.xlu0 %267, %v155
    %v269 = vpop.permute.xlu0 %268
    %272 = vset.pattern.permute.xlu0 32
    %273 = vperm.xlu0 %272, %v160
    %v274 = vpop.permute.xlu0 %273
    %v276 = vlaneseq
    %v277 = vshrl.u32 %v276, 7
    %v278 = vsub.s32 0, %v277
    %v279 = vrot.slane %v233, %v278
    %v280 = vadd.f32 %v239, %v279
    %v281 = vadd.f32 %v244, %v279
    %v282 = vadd.f32 %v249, %v279
    %v283 = vadd.f32 %v254, %v279
    %v284 = vadd.f32 %v259, %v279
    %v285 = vadd.f32 %v264, %v279
    %v286 = vadd.f32 %v269, %v279
    %v287 = vadd.f32 %v274, %v279
    %v288 = vmul.f32 %v280, 0.2
    %v289 = vmul.f32 %v281, 0.2
    %v290 = vmul.f32 %v282, 0.2
    %v291 = vmul.f32 %v283, 0.2
    %v292 = vmul.f32 %v284, 0.2
    %v293 = vmul.f32 %v285, 0.2
    %v294 = vmul.f32 %v286, 0.2
    %v295 = vmul.f32 %v287, 0.2
    %v296 = vmax.f32 %v280, %v288
    %v297 = vmax.f32 %v281, %v289
    %v298 = vmax.f32 %v282, %v290
    %v299 = vmax.f32 %v283, %v291
    %v300 = vmax.f32 %v284, %v292
    %v301 = vmax.f32 %v285, %v293
    %v302 = vmax.f32 %v286, %v294
    %v303 = vmax.f32 %v287, %v295
    %v304 = vld [vmem:[%s1] sm:$0xf]
    %v305 = vld [vmem:[%s1 + $0x4] sm:$0xf]
    %v306 = vld [vmem:[%s1 + $0x8] sm:$0xf]
    %v307 = vld [vmem:[%s1 + $0xc] sm:$0xf]
    %v308 = vld [vmem:[%s1 + $0x10] sm:$0xf]
    %v309 = vld [vmem:[%s1 + $0x14] sm:$0xf]
    %v310 = vld [vmem:[%s1 + $0x18] sm:$0xf]
    %v311 = vld [vmem:[%s1 + $0x1c] sm:$0xf]
    %v312 = vunpack.c.l.bf16 %v304
    %v313 = vunpack.c.l.bf16 %v305
    %v314 = vunpack.c.l.bf16 %v306
    %v315 = vunpack.c.l.bf16 %v307
    %v316 = vunpack.c.l.bf16 %v308
    %v317 = vunpack.c.l.bf16 %v309
    %v318 = vunpack.c.l.bf16 %v310
    %v319 = vunpack.c.l.bf16 %v311
    %v320 = vadd.f32 %v296, %v312
    %v321 = vadd.f32 %v297, %v313
    %v322 = vadd.f32 %v298, %v314
    %v323 = vadd.f32 %v299, %v315
    %v324 = vadd.f32 %v300, %v316
    %v325 = vadd.f32 %v301, %v317
    %v326 = vadd.f32 %v302, %v318
    %v327 = vadd.f32 %v303, %v319
    %vm328 = vcmask 523264
    %v329 = vsel %vm328, %v320, -inf
    %330 = vmax.xlane.f32.xlu0 %v329
    %v331 = vpop.xlane.xlu0 %330
    %v332 = vsel %vm328, %v321, -inf
    %333 = vmax.xlane.f32.xlu0 %v332
    %v334 = vpop.xlane.xlu0 %333
    %v335 = vsel %vm328, %v322, -inf
    %336 = vmax.xlane.f32.xlu0 %v335
    %v337 = vpop.xlane.xlu0 %336
    %v338 = vsel %vm328, %v323, -inf
    %339 = vmax.xlane.f32.xlu0 %v338
    %v340 = vpop.xlane.xlu0 %339
    %v341 = vsel %vm328, %v324, -inf
    %342 = vmax.xlane.f32.xlu0 %v341
    %v343 = vpop.xlane.xlu0 %342
    %v344 = vsel %vm328, %v325, -inf
    %345 = vmax.xlane.f32.xlu0 %v344
    %v346 = vpop.xlane.xlu0 %345
    %v347 = vsel %vm328, %v326, -inf
    %348 = vmax.xlane.f32.xlu0 %v347
    %v349 = vpop.xlane.xlu0 %348
    %v350 = vsel %vm328, %v327, -inf
    %351 = vmax.xlane.f32.xlu0 %v350
    %v352 = vpop.xlane.xlu0 %351
    %v353 = vsub.f32 %v320, %v331
    %v354 = vsub.f32 %v321, %v334
    %v355 = vsub.f32 %v322, %v337
    %v356 = vsub.f32 %v323, %v340
    %v357 = vsub.f32 %v324, %v343
    %v358 = vsub.f32 %v325, %v346
    %v359 = vsub.f32 %v326, %v349
    %v360 = vsub.f32 %v327, %v352
    %v361 = vmul.f32 %v353, 1.442695
    %v362 = vpow.pop %v361
    %v363 = vmul.f32 %v354, 1.442695
    %v364 = vpow.pop %v363
    %v365 = vmul.f32 %v355, 1.442695
    %v366 = vpow.pop %v365
    %v367 = vmul.f32 %v356, 1.442695
    %v368 = vpow.pop %v367
    %v369 = vmul.f32 %v357, 1.442695
    %v370 = vpow.pop %v369
    %v371 = vmul.f32 %v358, 1.442695
    %v372 = vpow.pop %v371
    %v373 = vmul.f32 %v359, 1.442695
    %v374 = vpow.pop %v373
    %v375 = vmul.f32 %v360, 1.442695
    %v376 = vpow.pop %v375
    %v377 = vsel %vm328, %v362, 0.0
    %378 = vadd.xlane.f32.xlu0 %v377
    %v379 = vpop.xlane.xlu0 %378
    %v380 = vsel %vm328, %v364, 0.0
    %381 = vadd.xlane.f32.xlu0 %v380
    %v382 = vpop.xlane.xlu0 %381
    %v383 = vsel %vm328, %v366, 0.0
    %384 = vadd.xlane.f32.xlu0 %v383
    %v385 = vpop.xlane.xlu0 %384
    %v386 = vsel %vm328, %v368, 0.0
    %387 = vadd.xlane.f32.xlu0 %v386
    %v388 = vpop.xlane.xlu0 %387
    %v389 = vsel %vm328, %v370, 0.0
    %390 = vadd.xlane.f32.xlu0 %v389
    %v391 = vpop.xlane.xlu0 %390
    %v392 = vsel %vm328, %v372, 0.0
    %393 = vadd.xlane.f32.xlu0 %v392
    %v394 = vpop.xlane.xlu0 %393
    %v395 = vsel %vm328, %v374, 0.0
    %396 = vadd.xlane.f32.xlu0 %v395
    %v397 = vpop.xlane.xlu0 %396
    %v398 = vsel %vm328, %v376, 0.0
    %399 = vadd.xlane.f32.xlu0 %v398
    %v400 = vpop.xlane.xlu0 %399
    %v401 = vlaneseq
    %v402 = vshrl.u32 %v401, 7
    %v403 = vsub.s32 0, %v402
    %v404 = vrot.slane %v165, %v403
    %v405 = vmul.f32 %v125, %v404
    %v406 = vmul.f32 %v130, %v404
    %v407 = vmul.f32 %v135, %v404
    %v408 = vmul.f32 %v140, %v404
    %v409 = vmul.f32 %v145, %v404
    %v410 = vmul.f32 %v150, %v404
    %v411 = vmul.f32 %v155, %v404
    %v412 = vmul.f32 %v160, %v404
    %v414 = vsel %vm328, %v362, 0
    %v417 = vsel %vm328, %v364, 0
    %v420 = vsel %vm328, %v366, 0
    %v423 = vsel %vm328, %v368, 0
    %v426 = vsel %vm328, %v370, 0
    %v429 = vsel %vm328, %v372, 0
    %v432 = vsel %vm328, %v374, 0
    %v435 = vsel %vm328, %v376, 0
    %437 = vmatprep.subr.mxu0 0.0
    %438 = vmatpush1.msra.mxu0 %v405
    %439 = vmatprep.subr.mxu0 0.0
    %440 = vmatpush1.msra.mxu0 %v406
    %441 = vmatprep.subr.mxu0 0.0
    %442 = vmatpush1.msra.mxu0 %v407
    %443 = vmatprep.subr.mxu0 0.0
    %444 = vmatpush1.msra.mxu0 %v408
    %445 = vmatprep.subr.mxu0 0.0
    %446 = vmatpush1.msra.mxu0 %v409
    %447 = vmatprep.subr.mxu0 0.0
    %448 = vmatpush1.msra.mxu0 %v410
    %449 = vmatprep.subr.mxu0 0.0
    %450 = vmatpush1.msra.mxu0 %v411
    %451 = vmatprep.subr.mxu0 0.0
    %452 = vmatpush1.msra.mxu0 %v412
    %453 = vmatprep.subr.mxu0 0.0
    %454 = vmatpush1.msra.mxu0 0.0
    %455 = vmatprep.subr.mxu0 0.0
    %456 = vmatpush1.msra.mxu0 0.0
    %457 = vmatprep.subr.mxu0 0.0
    %458 = vmatpush1.msra.mxu0 0.0
    %459 = vmatprep.subr.mxu0 0.0
    %460 = vmatpush1.msra.mxu0 0.0
    %461 = vmatprep.subr.mxu0 0.0
    %462 = vmatpush1.msra.mxu0 0.0
    %463 = vmatprep.subr.mxu0 0.0
    %464 = vmatpush1.msra.mxu0 0.0
    %465 = vmatprep.subr.mxu0 0.0
    %466 = vmatpush1.msra.mxu0 0.0
    %467 = vmatprep.subr.mxu0 0.0
    %468 = vmatpush1.msra.mxu0 0.0
    %469 = vmatprep.subr.mxu0 0.0
    %470 = vmatpush1.msra.mxu0 0.0
    %471 = vmatprep.subr.mxu0 0.0
    %472 = vmatpush1.msra.mxu0 0.0
    %473 = vmatprep.subr.mxu0 0.0
    %474 = vmatpush1.msra.mxu0 0.0
    %475 = vmatprep.subr.mxu0 0.0
    %476 = vmatpush1.msra.mxu0 0.0
    %477 = vmatprep.subr.mxu0 0.0
    %478 = vmatpush1.msra.mxu0 0.0
    %479 = vmatprep.subr.mxu0 0.0
    %480 = vmatpush1.msra.mxu0 0.0
    %481 = vmatprep.subr.mxu0 0.0
    %482 = vmatpush1.msra.mxu0 0.0
    %483 = vmatprep.subr.mxu0 0.0
    %484 = vmatpush1.msra.mxu0 0.0
    %485 = vmatprep.subr.mxu0 0.0
    %486 = vmatpush1.msra.mxu0 0.0
    %487 = vmatprep.subr.mxu0 0.0
    %488 = vmatpush1.msra.mxu0 0.0
    %489 = vmatprep.subr.mxu0 0.0
    %490 = vmatpush1.msra.mxu0 0.0
    %491 = vmatprep.subr.mxu0 0.0
    %492 = vmatpush1.msra.mxu0 0.0
    %493 = vmatprep.subr.mxu0 0.0
    %494 = vmatpush1.msra.mxu0 0.0
    %495 = vmatprep.subr.mxu0 0.0
    %496 = vmatpush1.msra.mxu0 0.0
    %497 = vmatprep.subr.mxu0 0.0
    %498 = vmatpush1.msra.mxu0 0.0
    %499 = vmatprep.subr.mxu0 0.0
    %500 = vmatpush1.msra.mxu0 0.0
    %501 = vmatprep.mubr.f32.mxu0 0.0
    %502 = vmatmul.mubr.f32.gmra.mrb[0].mxu0 %v414
    %v503 = vpop.f32.mrb[0].mxu0
    %v504 = vadd.f32 0.0, %v503
    %v505 = vpop.f32.mrb[0].mxu0
    %506 = vmatprep.mubr.f32.mxu0 0.0
    %507 = vmatmul.mubr.f32.gmra.mrb[0].mxu0 %v417
    %v508 = vpop.f32.mrb[0].mxu0
    %v509 = vadd.f32 0.0, %v508
    %v510 = vpop.f32.mrb[0].mxu0
    %511 = vmatprep.mubr.f32.mxu0 0.0
    %512 = vmatmul.mubr.f32.gmra.mrb[0].mxu0 %v420
    %v513 = vpop.f32.mrb[0].mxu0
    %v514 = vadd.f32 0.0, %v513
    %v515 = vpop.f32.mrb[0].mxu0
    %516 = vmatprep.mubr.f32.mxu0 0.0
    %517 = vmatmul.mubr.f32.gmra.mrb[0].mxu0 %v423
    %v518 = vpop.f32.mrb[0].mxu0
    %v519 = vadd.f32 0.0, %v518
    %v520 = vpop.f32.mrb[0].mxu0
    %521 = vmatprep.mubr.f32.mxu0 0.0
    %522 = vmatmul.mubr.f32.gmra.mrb[0].mxu0 %v426
    %v523 = vpop.f32.mrb[0].mxu0
    %v524 = vadd.f32 0.0, %v523
    %v525 = vpop.f32.mrb[0].mxu0
    %526 = vmatprep.mubr.f32.mxu0 0.0
    %527 = vmatmul.mubr.f32.gmra.mrb[0].mxu0 %v429
    %v528 = vpop.f32.mrb[0].mxu0
    %v529 = vadd.f32 0.0, %v528
    %v530 = vpop.f32.mrb[0].mxu0
    %531 = vmatprep.mubr.f32.mxu0 0.0
    %532 = vmatmul.mubr.f32.gmra.mrb[0].mxu0 %v432
    %v533 = vpop.f32.mrb[0].mxu0
    %v534 = vadd.f32 0.0, %v533
    %v535 = vpop.f32.mrb[0].mxu0
    %536 = vmatprep.mubr.f32.mxu0 0.0
    %537 = vmatmul.mubr.f32.gmra.mrb[0].mxu0 %v435
    %v538 = vpop.f32.mrb[0].mxu0
    %v539 = vadd.f32 0.0, %v538
    %v540 = vpop.f32.mrb[0].mxu0
    %541 = vdwg.mxu0
    %v542 = vrcp.pop %v379
    %v543 = vmul.f32 %v504, %v542
    %v544 = vrcp.pop %v382
    %v545 = vmul.f32 %v509, %v544
    %v546 = vrcp.pop %v385
    %v547 = vmul.f32 %v514, %v546
    %v548 = vrcp.pop %v388
    %v549 = vmul.f32 %v519, %v548
    %v550 = vrcp.pop %v391
    %v551 = vmul.f32 %v524, %v550
    %v552 = vrcp.pop %v394
    %v553 = vmul.f32 %v529, %v552
    %v554 = vrcp.pop %v397
    %v555 = vmul.f32 %v534, %v554
    %v556 = vrcp.pop %v400
    %v557 = vmul.f32 %v539, %v556
    %v558 = vlaneseq
    %v559 = vshrl.u32 %v558, 7
    %v560 = vsub.s32 0, %v559
    %v561 = vrot.slane %v164, %v560
    %v562 = vadd.f32 %v543, %v561
    %v563 = vadd.f32 %v545, %v561
    %v564 = vadd.f32 %v547, %v561
    %v565 = vadd.f32 %v549, %v561
    %v566 = vadd.f32 %v551, %v561
    %v567 = vadd.f32 %v553, %v561
    %v568 = vadd.f32 %v555, %v561
    %v569 = vadd.f32 %v557, %v561
    %v570 = vmul.f32 %v562, %v564
    %v571 = vmul.f32 %v563, %v565
    %v572 = vmul.f32 %v564, %v566
    %v573 = vmul.f32 %v565, %v567
    %v574 = vmul.f32 %v566, %v568
    %v575 = vmul.f32 %v567, %v569
    %576 = vadd.xlane.f32.xlu0 %v570
    %v577 = vpop.xlane.xlu0 %576
    %578 = vadd.xlane.f32.xlu0 %v571
    %v579 = vpop.xlane.xlu0 %578
    %580 = vadd.xlane.f32.xlu0 %v572
    %v581 = vpop.xlane.xlu0 %580
    %582 = vadd.xlane.f32.xlu0 %v573
    %v583 = vpop.xlane.xlu0 %582
    %584 = vadd.xlane.f32.xlu0 %v574
    %v585 = vpop.xlane.xlu0 %584
    %586 = vadd.xlane.f32.xlu0 %v575
    %v587 = vpop.xlane.xlu0 %586
    %v588 = vmul.f32 %v562, %v562
    %v589 = vmul.f32 %v563, %v563
    %v590 = vmul.f32 %v564, %v564
    %v591 = vmul.f32 %v565, %v565
    %v592 = vmul.f32 %v566, %v566
    %v593 = vmul.f32 %v567, %v567
    %594 = vadd.xlane.f32.xlu0 %v588
    %v595 = vpop.xlane.xlu0 %594
    %596 = vadd.xlane.f32.xlu0 %v589
    %v597 = vpop.xlane.xlu0 %596
    %598 = vadd.xlane.f32.xlu0 %v590
    %v599 = vpop.xlane.xlu0 %598
    %600 = vadd.xlane.f32.xlu0 %v591
    %v601 = vpop.xlane.xlu0 %600
    %602 = vadd.xlane.f32.xlu0 %v592
    %v603 = vpop.xlane.xlu0 %602
    %604 = vadd.xlane.f32.xlu0 %v593
    %v605 = vpop.xlane.xlu0 %604
    %v606 = vrsqrt.pop %v595
    %v607 = vmul.f32 %v595, %v606
    %vm608 = vcmp.eq.f32.partialorder %v595, inf
    %v609 = vsel %vm608, %v595, %v607
    %vm610 = vcmp.eq.f32.partialorder %v595, 0.0
    %v611 = vand.u32 %v595, 2147483648
    %v612 = vsel %vm610, %v611, %v609
    %v613 = vrsqrt.pop %v597
    %v614 = vmul.f32 %v597, %v613
    %vm615 = vcmp.eq.f32.partialorder %v597, inf
    %v616 = vsel %vm615, %v597, %v614
    %vm617 = vcmp.eq.f32.partialorder %v597, 0.0
    %v618 = vand.u32 %v597, 2147483648
    %v619 = vsel %vm617, %v618, %v616
    %v620 = vrsqrt.pop %v599
    %v621 = vmul.f32 %v599, %v620
    %vm622 = vcmp.eq.f32.partialorder %v599, inf
    %v623 = vsel %vm622, %v599, %v621
    %vm624 = vcmp.eq.f32.partialorder %v599, 0.0
    %v625 = vand.u32 %v599, 2147483648
    %v626 = vsel %vm624, %v625, %v623
    %v627 = vrsqrt.pop %v601
    %v628 = vmul.f32 %v601, %v627
    %vm629 = vcmp.eq.f32.partialorder %v601, inf
    %v630 = vsel %vm629, %v601, %v628
    %vm631 = vcmp.eq.f32.partialorder %v601, 0.0
    %v632 = vand.u32 %v601, 2147483648
    %v633 = vsel %vm631, %v632, %v630
    %v634 = vrsqrt.pop %v603
    %v635 = vmul.f32 %v603, %v634
    %vm636 = vcmp.eq.f32.partialorder %v603, inf
    %v637 = vsel %vm636, %v603, %v635
    %vm638 = vcmp.eq.f32.partialorder %v603, 0.0
    %v639 = vand.u32 %v603, 2147483648
    %v640 = vsel %vm638, %v639, %v637
    %v641 = vrsqrt.pop %v605
    %v642 = vmul.f32 %v605, %v641
    %vm643 = vcmp.eq.f32.partialorder %v605, inf
    %v644 = vsel %vm643, %v605, %v642
    %vm645 = vcmp.eq.f32.partialorder %v605, 0.0
    %v646 = vand.u32 %v605, 2147483648
    %v647 = vsel %vm645, %v646, %v644
    %v648 = vmax.f32 %v612, 1e-08
    %v649 = vmax.f32 %v619, 1e-08
    %v650 = vmax.f32 %v626, 1e-08
    %v651 = vmax.f32 %v633, 1e-08
    %v652 = vmax.f32 %v640, 1e-08
    %v653 = vmax.f32 %v647, 1e-08
    %v654 = vmul.f32 %v568, %v568
    %v655 = vmul.f32 %v569, %v569
    %656 = vadd.xlane.f32.xlu0 %v654
    %v657 = vpop.xlane.xlu0 %656
    %658 = vadd.xlane.f32.xlu0 %v655
    %v659 = vpop.xlane.xlu0 %658
    %v660 = vrsqrt.pop %v657
    %v661 = vmul.f32 %v657, %v660
    %vm662 = vcmp.eq.f32.partialorder %v657, inf
    %v663 = vsel %vm662, %v657, %v661
    %vm664 = vcmp.eq.f32.partialorder %v657, 0.0
    %v665 = vand.u32 %v657, 2147483648
    %v666 = vsel %vm664, %v665, %v663
    %v667 = vrsqrt.pop %v659
    %v668 = vmul.f32 %v659, %v667
    %vm669 = vcmp.eq.f32.partialorder %v659, inf
    %v670 = vsel %vm669, %v659, %v668
    %vm671 = vcmp.eq.f32.partialorder %v659, 0.0
    %v672 = vand.u32 %v659, 2147483648
    %v673 = vsel %vm671, %v672, %v670
    %v674 = vmax.f32 %v666, 1e-08
    %v675 = vmax.f32 %v673, 1e-08
    %v676 = vmul.f32 %v648, %v650
    %v677 = vmul.f32 %v649, %v651
    %v678 = vmul.f32 %v650, %v652
    %v679 = vmul.f32 %v651, %v653
    %v680 = vmul.f32 %v652, %v674
    %v681 = vmul.f32 %v653, %v675
    %v682 = vrcp.pop %v676
    %v683 = vmul.f32 %v577, %v682
    %v684 = vrcp.pop %v677
    %v685 = vmul.f32 %v579, %v684
    %v686 = vrcp.pop %v678
    %v687 = vmul.f32 %v581, %v686
    %v688 = vrcp.pop %v679
    %v689 = vmul.f32 %v583, %v688
    %v690 = vrcp.pop %v680
    %v691 = vmul.f32 %v585, %v690
    %v692 = vrcp.pop %v681
    %v693 = vmul.f32 %v587, %v692
    %v694 = vmul.f32 %v683, %v562
    %v695 = vmul.f32 %v685, %v563
    %v696 = vmul.f32 %v687, %v564
    %v697 = vmul.f32 %v689, %v565
    %v698 = vmul.f32 %v691, %v566
    %v699 = vmul.f32 %v693, %v567
    %v700 = vld [vmem:[%s5] sm:$0xff]
    %v701 = vld [vmem:[%s5 + $0x8] sm:$0xff]
    %v702 = vld [vmem:[%s5 + $0x10] sm:$0xff]
    %v703 = vld [vmem:[%s5 + $0x18] sm:$0xff]
    %v704 = vld [vmem:[%s5 + $0x20] sm:$0xff]
    %v705 = vld [vmem:[%s5 + $0x28] sm:$0xff]
    %v706 = vld [vmem:[%s5 + $0x30] sm:$0xff]
    %v707 = vld [vmem:[%s5 + $0x38] sm:$0xff]
    %v708 = vld [vmem:[%s5 + $0x40] sm:$0xff]
    %v709 = vld [vmem:[%s5 + $0x48] sm:$0xff]
    %v710 = vld [vmem:[%s5 + $0x50] sm:$0xff]
    %v711 = vld [vmem:[%s5 + $0x58] sm:$0xff]
    %v712 = vld [vmem:[%s5 + $0x60] sm:$0xff]
    %v713 = vld [vmem:[%s5 + $0x68] sm:$0xff]
    %v714 = vld [vmem:[%s5 + $0x70] sm:$0xff]
    %v715 = vld [vmem:[%s5 + $0x78] sm:$0xff]
    %716 = vmatprep.subr.mxu0 0.0
    %717 = vmatpush1.msra.mxu0 %v700
    %718 = vmatprep.subr.mxu0 0.0
    %719 = vmatpush1.msra.mxu0 %v701
    %720 = vmatprep.subr.mxu0 0.0
    %721 = vmatpush1.msra.mxu0 %v702
    %722 = vmatprep.subr.mxu0 0.0
    %723 = vmatpush1.msra.mxu0 %v703
    %724 = vmatprep.subr.mxu0 0.0
    %725 = vmatpush1.msra.mxu0 %v704
    %726 = vmatprep.subr.mxu0 0.0
    %727 = vmatpush1.msra.mxu0 %v705
    %728 = vmatprep.subr.mxu0 0.0
    %729 = vmatpush1.msra.mxu0 %v706
    %730 = vmatprep.subr.mxu0 0.0
    %731 = vmatpush1.msra.mxu0 %v707
    %732 = vmatprep.subr.mxu0 0.0
    %733 = vmatpush1.msra.mxu0 %v708
    %734 = vmatprep.subr.mxu0 0.0
    %735 = vmatpush1.msra.mxu0 %v709
    %736 = vmatprep.subr.mxu0 0.0
    %737 = vmatpush1.msra.mxu0 %v710
    %738 = vmatprep.subr.mxu0 0.0
    %739 = vmatpush1.msra.mxu0 %v711
    %740 = vmatprep.subr.mxu0 0.0
    %741 = vmatpush1.msra.mxu0 %v712
    %742 = vmatprep.subr.mxu0 0.0
    %743 = vmatpush1.msra.mxu0 %v713
    %744 = vmatprep.subr.mxu0 0.0
    %745 = vmatpush1.msra.mxu0 %v714
    %746 = vmatprep.subr.mxu0 0.0
    %747 = vmatpush1.msra.mxu0 %v715
    %748 = vmatprep.subr.mxu0 0.0
    %749 = vmatpush1.msra.mxu0 0.0
    %750 = vmatprep.subr.mxu0 0.0
    %751 = vmatpush1.msra.mxu0 0.0
    %752 = vmatprep.subr.mxu0 0.0
    %753 = vmatpush1.msra.mxu0 0.0
    %754 = vmatprep.subr.mxu0 0.0
    %755 = vmatpush1.msra.mxu0 0.0
    %756 = vmatprep.subr.mxu0 0.0
    %757 = vmatpush1.msra.mxu0 0.0
    %758 = vmatprep.subr.mxu0 0.0
    %759 = vmatpush1.msra.mxu0 0.0
    %760 = vmatprep.subr.mxu0 0.0
    %761 = vmatpush1.msra.mxu0 0.0
    %762 = vmatprep.subr.mxu0 0.0
    %763 = vmatpush1.msra.mxu0 0.0
    %764 = vmatprep.subr.mxu0 0.0
    %765 = vmatpush1.msra.mxu0 0.0
    %766 = vmatprep.subr.mxu0 0.0
    %767 = vmatpush1.msra.mxu0 0.0
    %768 = vmatprep.subr.mxu0 0.0
    %769 = vmatpush1.msra.mxu0 0.0
    %770 = vmatprep.subr.mxu0 0.0
    %771 = vmatpush1.msra.mxu0 0.0
    %772 = vmatprep.subr.mxu0 0.0
    %773 = vmatpush1.msra.mxu0 0.0
    %774 = vmatprep.subr.mxu0 0.0
    %775 = vmatpush1.msra.mxu0 0.0
    %776 = vmatprep.subr.mxu0 0.0
    %777 = vmatpush1.msra.mxu0 0.0
    %778 = vmatprep.subr.mxu0 0.0
    %779 = vmatpush1.msra.mxu0 0.0
    %780 = vmatprep.mubr.f32.mxu0 0.0
    %781 = vmatmul.mubr.f32.gmra.mrb[0].mxu0 %v694
    %v782 = vpop.f32.mrb[0].mxu0
    %v783 = vadd.f32 0.0, %v782
    %v784 = vpop.f32.mrb[0].mxu0
    %785 = vmatprep.mubr.f32.mxu0 0.0
    %786 = vmatmul.mubr.f32.gmra.mrb[0].mxu0 %v695
    %v787 = vpop.f32.mrb[0].mxu0
    %v788 = vadd.f32 0.0, %v787
    %v789 = vpop.f32.mrb[0].mxu0
    %790 = vmatprep.mubr.f32.mxu0 0.0
    %791 = vmatmul.mubr.f32.gmra.mrb[0].mxu0 %v696
    %v792 = vpop.f32.mrb[0].mxu0
    %v793 = vadd.f32 0.0, %v792
    %v794 = vpop.f32.mrb[0].mxu0
    %795 = vmatprep.mubr.f32.mxu0 0.0
    %796 = vmatmul.mubr.f32.gmra.mrb[0].mxu0 %v697
    %v797 = vpop.f32.mrb[0].mxu0
    %v798 = vadd.f32 0.0, %v797
    %v799 = vpop.f32.mrb[0].mxu0
    %800 = vmatprep.mubr.f32.mxu0 0.0
    %801 = vmatmul.mubr.f32.gmra.mrb[0].mxu0 %v698
    %v802 = vpop.f32.mrb[0].mxu0
    %v803 = vadd.f32 0.0, %v802
    %v804 = vpop.f32.mrb[0].mxu0
    %805 = vmatprep.mubr.f32.mxu0 0.0
    %806 = vmatmul.mubr.f32.gmra.mrb[0].mxu0 %v699
    %v807 = vpop.f32.mrb[0].mxu0
    %v808 = vadd.f32 0.0, %v807
    %v809 = vpop.f32.mrb[0].mxu0
    %810 = vdwg.mxu0
    %v811 = vmul.f32 %v683, %v564
    %v812 = vmul.f32 %v685, %v565
    %v813 = vmul.f32 %v687, %v566
    %v814 = vmul.f32 %v689, %v567
    %v815 = vmul.f32 %v691, %v568
    %v816 = vmul.f32 %v693, %v569
    %v817 = vld [vmem:[%s4] sm:$0xff]
    %v818 = vld [vmem:[%s4 + $0x8] sm:$0xff]
    %v819 = vld [vmem:[%s4 + $0x10] sm:$0xff]
    %v820 = vld [vmem:[%s4 + $0x18] sm:$0xff]
    %v821 = vld [vmem:[%s4 + $0x20] sm:$0xff]
    %v822 = vld [vmem:[%s4 + $0x28] sm:$0xff]
    %v823 = vld [vmem:[%s4 + $0x30] sm:$0xff]
    %v824 = vld [vmem:[%s4 + $0x38] sm:$0xff]
    %v825 = vld [vmem:[%s4 + $0x40] sm:$0xff]
    %v826 = vld [vmem:[%s4 + $0x48] sm:$0xff]
    %v827 = vld [vmem:[%s4 + $0x50] sm:$0xff]
    %v828 = vld [vmem:[%s4 + $0x58] sm:$0xff]
    %v829 = vld [vmem:[%s4 + $0x60] sm:$0xff]
    %v830 = vld [vmem:[%s4 + $0x68] sm:$0xff]
    %v831 = vld [vmem:[%s4 + $0x70] sm:$0xff]
    %v832 = vld [vmem:[%s4 + $0x78] sm:$0xff]
    %833 = vmatprep.subr.mxu0 0.0
    %834 = vmatpush1.msra.mxu0 %v817
    %835 = vmatprep.subr.mxu0 0.0
    %836 = vmatpush1.msra.mxu0 %v818
    %837 = vmatprep.subr.mxu0 0.0
    %838 = vmatpush1.msra.mxu0 %v819
    %839 = vmatprep.subr.mxu0 0.0
    %840 = vmatpush1.msra.mxu0 %v820
    %841 = vmatprep.subr.mxu0 0.0
    %842 = vmatpush1.msra.mxu0 %v821
    %843 = vmatprep.subr.mxu0 0.0
    %844 = vmatpush1.msra.mxu0 %v822
    %845 = vmatprep.subr.mxu0 0.0
    %846 = vmatpush1.msra.mxu0 %v823
    %847 = vmatprep.subr.mxu0 0.0
    %848 = vmatpush1.msra.mxu0 %v824
    %849 = vmatprep.subr.mxu0 0.0
    %850 = vmatpush1.msra.mxu0 %v825
    %851 = vmatprep.subr.mxu0 0.0
    %852 = vmatpush1.msra.mxu0 %v826
    %853 = vmatprep.subr.mxu0 0.0
    %854 = vmatpush1.msra.mxu0 %v827
    %855 = vmatprep.subr.mxu0 0.0
    %856 = vmatpush1.msra.mxu0 %v828
    %857 = vmatprep.subr.mxu0 0.0
    %858 = vmatpush1.msra.mxu0 %v829
    %859 = vmatprep.subr.mxu0 0.0
    %860 = vmatpush1.msra.mxu0 %v830
    %861 = vmatprep.subr.mxu0 0.0
    %862 = vmatpush1.msra.mxu0 %v831
    %863 = vmatprep.subr.mxu0 0.0
    %864 = vmatpush1.msra.mxu0 %v832
    %865 = vmatprep.subr.mxu0 0.0
    %866 = vmatpush1.msra.mxu0 0.0
    %867 = vmatprep.subr.mxu0 0.0
    %868 = vmatpush1.msra.mxu0 0.0
    %869 = vmatprep.subr.mxu0 0.0
    %870 = vmatpush1.msra.mxu0 0.0
    %871 = vmatprep.subr.mxu0 0.0
    %872 = vmatpush1.msra.mxu0 0.0
    %873 = vmatprep.subr.mxu0 0.0
    %874 = vmatpush1.msra.mxu0 0.0
    %875 = vmatprep.subr.mxu0 0.0
    %876 = vmatpush1.msra.mxu0 0.0
    %877 = vmatprep.subr.mxu0 0.0
    %878 = vmatpush1.msra.mxu0 0.0
    %879 = vmatprep.subr.mxu0 0.0
    %880 = vmatpush1.msra.mxu0 0.0
    %881 = vmatprep.subr.mxu0 0.0
    %882 = vmatpush1.msra.mxu0 0.0
    %883 = vmatprep.subr.mxu0 0.0
    %884 = vmatpush1.msra.mxu0 0.0
    %885 = vmatprep.subr.mxu0 0.0
    %886 = vmatpush1.msra.mxu0 0.0
    %887 = vmatprep.subr.mxu0 0.0
    %888 = vmatpush1.msra.mxu0 0.0
    %889 = vmatprep.subr.mxu0 0.0
    %890 = vmatpush1.msra.mxu0 0.0
    %891 = vmatprep.subr.mxu0 0.0
    %892 = vmatpush1.msra.mxu0 0.0
    %893 = vmatprep.subr.mxu0 0.0
    %894 = vmatpush1.msra.mxu0 0.0
    %895 = vmatprep.subr.mxu0 0.0
    %896 = vmatpush1.msra.mxu0 0.0
    %897 = vmatprep.mubr.f32.mxu0 0.0
    %898 = vmatmul.mubr.f32.gmra.mrb[0].mxu0 %v811
    %v899 = vpop.f32.mrb[0].mxu0
    %v900 = vadd.f32 0.0, %v899
    %v901 = vpop.f32.mrb[0].mxu0
    %902 = vmatprep.mubr.f32.mxu0 0.0
    %903 = vmatmul.mubr.f32.gmra.mrb[0].mxu0 %v812
    %v904 = vpop.f32.mrb[0].mxu0
    %v905 = vadd.f32 0.0, %v904
    %v906 = vpop.f32.mrb[0].mxu0
    %907 = vmatprep.mubr.f32.mxu0 0.0
    %908 = vmatmul.mubr.f32.gmra.mrb[0].mxu0 %v813
    %v909 = vpop.f32.mrb[0].mxu0
    %v910 = vadd.f32 0.0, %v909
    %v911 = vpop.f32.mrb[0].mxu0
    %912 = vmatprep.mubr.f32.mxu0 0.0
    %913 = vmatmul.mubr.f32.gmra.mrb[0].mxu0 %v814
    %v914 = vpop.f32.mrb[0].mxu0
    %v915 = vadd.f32 0.0, %v914
    %v916 = vpop.f32.mrb[0].mxu0
    %917 = vmatprep.mubr.f32.mxu0 0.0
    %918 = vmatmul.mubr.f32.gmra.mrb[0].mxu0 %v815
    %v919 = vpop.f32.mrb[0].mxu0
    %v920 = vadd.f32 0.0, %v919
    %v921 = vpop.f32.mrb[0].mxu0
    %922 = vmatprep.mubr.f32.mxu0 0.0
    %923 = vmatmul.mubr.f32.gmra.mrb[0].mxu0 %v816
    %v924 = vpop.f32.mrb[0].mxu0
    %v925 = vadd.f32 0.0, %v924
    %v926 = vpop.f32.mrb[0].mxu0
    %927 = vdwg.mxu0
    %v928 = vadd.f32 %v562, 0.0
    %v929 = vadd.f32 %v563, 0.0
    %v930 = vadd.f32 %v564, %v783
    %v931 = vadd.f32 %v565, %v788
    %v932 = vadd.f32 %v566, %v793
    %v933 = vadd.f32 %v567, %v798
    %v934 = vadd.f32 %v568, %v803
    %v935 = vadd.f32 %v569, %v808
    %v936 = vadd.f32 %v928, %v900
    %v937 = vadd.f32 %v929, %v905
    %v938 = vadd.f32 %v930, %v910
    %v939 = vadd.f32 %v931, %v915
    %v940 = vadd.f32 %v932, %v920
    %v941 = vadd.f32 %v933, %v925
    %v942 = vadd.f32 %v934, 0.0
    %v943 = vadd.f32 %v935, 0.0
    %944 = vst [vmem:[#allocation2] sm:$0xff] %v936
    %945 = vst [vmem:[#allocation2 + $0x8] sm:$0xff] %v937
    %946 = vst [vmem:[#allocation2 + $0x10] sm:$0xff] %v938
    %947 = vst [vmem:[#allocation2 + $0x18] sm:$0xff] %v939
    %948 = vst [vmem:[#allocation2 + $0x20] sm:$0xff] %v940
    %949 = vst [vmem:[#allocation2 + $0x28] sm:$0xff] %v941
    %950 = vst [vmem:[#allocation2 + $0x30] sm:$0xff] %v942
    %951 = vst [vmem:[#allocation2 + $0x38] sm:$0xff] %v943
    // Predicated region
    $region26: #{d3_graph_conv_at.1} parent=1 // pred_check
      _
    $region27: #{d3_graph_conv_at.1} parent=1 // pred_check_branch
      %953 = sbr.rel (0) target = $region29
    $region28: #{d3_graph_conv_at.1} parent=1 // pred_region
      %s955 = ssub.s32 1024, 1024
      %956 = vsyncadd [#allocation3], %s955
      %s957 = sshll.u32 [#allocation2], 4
      %s958 = int_to_ptr.vmem [resolvable:$true] %s957
      %963 = dma.vmem_to_hbm [thread:$0]  %s958, 1024, %s6, [#allocation3], 128, 128, 8
    $region29: #{d3_graph_conv_at.1} parent=1 // pred_fallthru
      _
    // Predicated region
    $region30: #{d3_graph_conv_at.1} parent=1 // pred_check
      _
    $region31: #{d3_graph_conv_at.1} parent=1 // pred_check_branch
      %965 = sbr.rel (0) target = $region33
    $region32: #{d3_graph_conv_at.1} parent=1 // pred_region
      %966 = dma.done [#allocation3], 1024
    $region33: #{d3_graph_conv_at.1} parent=1 // pred_fallthru
      _
    %967 = vsyncpa [#allocation3], 1

</llo_original>
